<compile_context>
chip_gen: v5e
topology: v5e:2x2
jax: 0.10.0
libtpu: 0.0.40
codegen_flags: <defaults>
</compile_context>

<pallas_src>
import functools

import jax
import jax.numpy as jnp
from jax.experimental import pallas as pl
from jax.experimental.pallas import tpu as pltpu


def _round_up(n, m):
    return ((n + m - 1) // m) * m


def _cdiv(a, b):
    return -(-a // b)


@functools.lru_cache(maxsize=1)
def _vmem_capacity_bytes():
    try:
        return int(pltpu.get_tpu_info().vmem_capacity_bytes)
    except Exception:
        return 64 * 1024 * 1024  # conservative (v7x per-core VMEM)


def _phys_bytes(rows, lanes, itemsize):
    """Physical VMEM footprint of a (rows, lanes) block (sublane/lane padding)."""
    sub = max(1, 32 // itemsize)
    return _round_up(rows, sub) * _round_up(lanes, 128) * itemsize


# ----------------------------------------------------------------------------
# Fused single-pass kernel: one batch slab per grid step.
# ----------------------------------------------------------------------------
def _se_fused_kernel(x_ref, w1t_ref, w2t_ref, y_ref, o_ref, *, inv_hw):
    """x_ref: (1, c, hw) native; w1t: (c, c_r) f32; w2t: (c_r, c) f32;
    y_ref: (1, c, 1) native; o_ref: (1, c, hw) native."""
    # Squeeze: lane-axis (XLU) reduction, accumulated in f32.
    m = jnp.sum(x_ref[...].astype(jnp.float32), axis=-1) * inv_hw      # (1, c)

    # Excitation: Linear -> ReLU -> Linear -> Sigmoid (tiny MXU + EUP work).
    h = jnp.dot(m, w1t_ref[...], preferred_element_type=jnp.float32)
    h = jnp.maximum(h, 0.0)                                            # (1, c_r)
    s = jax.nn.sigmoid(jnp.dot(h, w2t_ref[...],
                               preferred_element_type=jnp.float32))    # (1, c)

    s = s.astype(o_ref.dtype)[:, :, None]                              # (1, c, 1)
    y_ref[...] = s
    # Re-read x from its VMEM ref (vld is cheap); multiply in native dtype so
    # no extra f32 slab temporary is materialized.
    o_ref[...] = (x_ref[...] * s).astype(o_ref.dtype)


# ----------------------------------------------------------------------------
# Tiled path, pass 1: spatial pooling -> per-(batch, channel-block) means.
# ----------------------------------------------------------------------------
def _se_pool_kernel(x_ref, m_ref, acc_ref, *, inv_hw, hw, hw_tile, mask_tail):
    t = pl.program_id(2)

    @pl.when(t == 0)
    def _():
        acc_ref[...] = jnp.zeros_like(acc_ref)

    x = x_ref[...]
    if mask_tail:
        # Ragged hw tail: out-of-bounds lanes of the last tile are not
        # guaranteed zero, so mask them out of the sum.
        lane = jax.lax.broadcasted_iota(jnp.int32, x.shape, 2)
        x = jnp.where(t * hw_tile + lane < hw, x, jnp.zeros_like(x))

    acc_ref[...] += jnp.sum(x.astype(jnp.float32), axis=-1, keepdims=True)

    @pl.when(t == pl.num_programs(2) - 1)
    def _():
        m_ref[...] = acc_ref[...] * inv_hw                 # (1, c_tile, 1) f32


# ----------------------------------------------------------------------------
# Tiled path, pass 2: scale x by per-channel gates.
# ----------------------------------------------------------------------------
def _se_scale_kernel(x_ref, g_ref, o_ref):
    o_ref[...] = (x_ref[...] * g_ref[...]).astype(o_ref.dtype)


# ----------------------------------------------------------------------------
# Wrapper
# ----------------------------------------------------------------------------
def se_block(x, w1, w2, *, max_fused_bytes=None, tiled_block_bytes=None):
    """SE block forward.

    x  : (bs, c, h, w), any float dtype (kept native end-to-end).
    w1 : (c//r, c)  PyTorch Linear(c, c//r, bias=False) weight.
    w2 : (c, c//r)  PyTorch Linear(c//r, c, bias=False) weight.

    Returns (y, out) matching the PyTorch module:
      y   : (bs, c, 1, 1)  channel gates (x.dtype)
      out : (bs, c, h, w)  x scaled by the gates (x.dtype)
    """
    bs, c, h, w_sp = x.shape
    hw = h * w_sp
    c_r = w1.shape[0]
    dt = x.dtype
    itemsize = jnp.dtype(dt).itemsize
    inv_hw = float(1.0 / hw)

    vmem_limit = int(_vmem_capacity_bytes() * 0.8)   # leave compiler headroom

    x_flat = x.reshape(bs, c, hw)                    # metadata-only, no copy
    w1t = w1.astype(jnp.float32).T                   # (c, c_r)
    w2t = w2.astype(jnp.float32).T                   # (c_r, c)

    # Fused-path VMEM need: 2x in + 2x out (double-buffered, native dtype)
    # + one f32 reduction temporary + weights + slack.
    slab_native = _phys_bytes(c, hw, itemsize)
    weights_bytes = _phys_bytes(c, c_r, 4) + _phys_bytes(c_r, c, 4)
    fused_need = 4 * slab_native + _phys_bytes(c, hw, 4) + weights_bytes + (1 << 20)
    fused_cap = vmem_limit if max_fused_bytes is None else int(max_fused_bytes)

    if fused_need <= fused_cap:
        # ---------------- fused single pass ----------------
        y_flat, out_flat = pl.pallas_call(
            functools.partial(_se_fused_kernel, inv_hw=inv_hw),
            grid=(bs,),
            in_specs=[
                pl.BlockSpec((1, c, hw), lambda b: (b, 0, 0)),
                pl.BlockSpec((c, c_r), lambda b: (0, 0)),
                pl.BlockSpec((c_r, c), lambda b: (0, 0)),
            ],
            out_specs=(
                pl.BlockSpec((1, c, 1), lambda b: (b, 0, 0)),
                pl.BlockSpec((1, c, hw), lambda b: (b, 0, 0)),
            ),
            out_shape=(
                jax.ShapeDtypeStruct((bs, c, 1), dt),
                jax.ShapeDtypeStruct((bs, c, hw), dt),
            ),
            compiler_params=pltpu.CompilerParams(
                dimension_semantics=("parallel",),
                vmem_limit_bytes=vmem_limit,
            ),
        )(x_flat, w1t, w2t)
        y = y_flat.reshape(bs, c, 1, 1)
        out = out_flat.reshape(bs, c, h, w_sp)
        return y, out

    # ---------------- tiled two-pass path ----------------
    # Block budget (pass 2 holds in+out double-buffered; pass 1 has in x2 plus
    # mask/convert temporaries).
    if tiled_block_bytes is None:
        block_budget = max(vmem_limit - (2 << 20), 1 << 20)
    else:
        block_budget = max(int(tiled_block_bytes), 8 * 128 * 4 * itemsize)
    per_elem = max(4 * itemsize, 3 * itemsize + 4)
    max_block_elems = max(8 * 128, block_budget // per_elem)

    # Channel blocking: (a) VMEM fallback for very wide layers, (b) gives the
    # second v7x TensorCore pooling work when bs == 1.
    c_tile = c
    if bs == 1 and c >= 16:
        c_tile = _round_up(_cdiv(c, 2), 8)
    max_ct = max(8, ((max_block_elems // 128) // 8) * 8)
    c_tile = min(c_tile, max_ct)
    if c_tile >= c:
        c_tile = c
    n_cb = _cdiv(c, c_tile)

    sub = max(1, 32 // itemsize)
    ct_phys = _round_up(c_tile, sub)
    lane_budget = max(128, ((max_block_elems // ct_phys) // 128) * 128)
    hw_tile = hw if hw <= lane_budget else lane_budget
    n_t = _cdiv(hw, hw_tile)
    mask_tail = (hw % hw_tile) != 0

    # Pass 1: pooled per-channel means (f32).
    means = pl.pallas_call(
        functools.partial(_se_pool_kernel, inv_hw=inv_hw, hw=hw,
                          hw_tile=hw_tile, mask_tail=mask_tail),
        grid=(bs, n_cb, n_t),
        in_specs=[pl.BlockSpec((1, c_tile, hw_tile), lambda b, cb, t: (b, cb, t))],
        out_specs=pl.BlockSpec((1, c_tile, 1), lambda b, cb, t: (b, cb, 0)),
        out_shape=jax.ShapeDtypeStruct((bs, c, 1), jnp.float32),
        scratch_shapes=[pltpu.VMEM((1, c_tile, 1), jnp.float32)],
        compiler_params=pltpu.CompilerParams(
            dimension_semantics=("parallel", "parallel", "arbitrary"),
            vmem_limit_bytes=vmem_limit,
        ),
    )(x_flat)

    # Excitation for all batches as one small batched matmul in plain JAX
    # (negligible FLOPs; keeps the pool kernel simple and weight-free).
    m = means[:, :, 0]                                        # (bs, c) f32
    hdn = jnp.maximum(m @ w1t, 0.0)                           # (bs, c_r)
    g = jax.nn.sigmoid(hdn @ w2t)                             # (bs, c) f32
    gates = g.astype(dt).reshape(bs, c, 1)

    # Pass 2: scale (fully parallel, pipelined over channel/hw tiles).
    out_flat = pl.pallas_call(
        _se_scale_kernel,
        grid=(bs, n_cb, n_t),
        in_specs=[
            pl.BlockSpec((1, c_tile, hw_tile), lambda b, cb, t: (b, cb, t)),
            pl.BlockSpec((1, c_tile, 1), lambda b, cb, t: (b, cb, 0)),
        ],
        out_specs=pl.BlockSpec((1, c_tile, hw_tile), lambda b, cb, t: (b, cb, t)),
        out_shape=jax.ShapeDtypeStruct((bs, c, hw), dt),
        compiler_params=pltpu.CompilerParams(
            dimension_semantics=("parallel", "parallel", "parallel"),
            vmem_limit_bytes=vmem_limit,
        ),
    )(x_flat, gates)

    y = gates.reshape(bs, c, 1, 1)
    out = out_flat.reshape(bs, c, h, w_sp)
    return y, out


if __name__ == "__main__":
    def reference(x, w1, w2):
        xf = x.astype(jnp.float32)
        m = jnp.mean(xf, axis=(2, 3))
        s = jax.nn.sigmoid(
            jnp.maximum(m @ w1.T.astype(jnp.float32), 0.0) @ w2.T.astype(jnp.float32))
        y = s.reshape(x.shape[0], x.shape[1], 1, 1)
        return y, xf * y

    key = jax.random.PRNGKey(0)

    # Case 1: small aligned-ish shape; fused single-pass path (c=10, r=5).
    bs, c, h, w, r = 2, 10, 16, 16, 5
    k1, k2, k3, key = jax.random.split(key, 4)
    x = jax.random.normal(k1, (bs, c, h, w), dtype=jnp.float32)
    w1 = 0.1 * jax.random.normal(k2, (c // r, c), dtype=jnp.float32)
    w2 = 0.1 * jax.random.normal(k3, (c, c // r), dtype=jnp.float32)
    y_ref, out_ref = reference(x, w1, w2)

    y, out = se_block(x, w1, w2)
    jax.block_until_ready((y, out))
    assert jnp.allclose(y, y_ref, atol=1e-5, rtol=1e-5)
    assert jnp.allclose(out, out_ref, atol=1e-5, rtol=1e-5)

    # Same inputs, forced onto the tiled two-pass path with small blocks.
    y2, out2 = se_block(x, w1, w2, max_fused_bytes=0, tiled_block_bytes=32 * 1024)
    jax.block_until_ready((y2, out2))
    assert jnp.allclose(y2, y_ref, atol=1e-5, rtol=1e-5)
    assert jnp.allclose(out2, out_ref, atol=1e-5, rtol=1e-5)

    # Case 2: ragged shapes (c=20, hw=225 not 128-aligned), bs=1 so the tiled
    # pool pass also exercises the channel-block split and the lane mask.
    bs, c, h, w, r = 1, 20, 15, 15, 5
    k1, k2, k3, key = jax.random.split(key, 4)
    x = jax.random.normal(k1, (bs, c, h, w), dtype=jnp.float32)
    w1 = 0.1 * jax.random.normal(k2, (c // r, c), dtype=jnp.float32)
    w2 = 0.1 * jax.random.normal(k3, (c, c // r), dtype=jnp.float32)
    y_ref, out_ref = reference(x, w1, w2)

    y, out = se_block(x, w1, w2)                       # fused, unpadded ragged dims
    jax.block_until_ready((y, out))
    assert jnp.allclose(y, y_ref, atol=1e-5, rtol=1e-5)
    assert jnp.allclose(out, out_ref, atol=1e-5, rtol=1e-5)

    y2, out2 = se_block(x, w1, w2, max_fused_bytes=0, tiled_block_bytes=32 * 1024)
    jax.block_until_ready((y2, out2))
    assert jnp.allclose(y2, y_ref, atol=1e-5, rtol=1e-5)
    assert jnp.allclose(out2, out_ref, atol=1e-5, rtol=1e-5)

    # Case 3: bf16 activations stay bf16 end-to-end (halves HBM traffic).
    xb = x.astype(jnp.bfloat16)
    y_refb, out_refb = reference(xb, w1, w2)
    yb, outb = se_block(xb, w1, w2)
    jax.block_until_ready((yb, outb))
    assert jnp.allclose(yb.astype(jnp.float32), y_refb, atol=5e-2, rtol=5e-2)
    assert jnp.allclose(outb.astype(jnp.float32), out_refb, atol=5e-2, rtol=5e-2)

    yb2, outb2 = se_block(xb, w1, w2, max_fused_bytes=0, tiled_block_bytes=32 * 1024)
    jax.block_until_ready((yb2, outb2))
    assert jnp.allclose(yb2.astype(jnp.float32), y_refb, atol=5e-2, rtol=5e-2)
    assert jnp.allclose(outb2.astype(jnp.float32), out_refb, atol=5e-2, rtol=5e-2)

    print("KERNEL_OK")
</pallas_src>

<mosaic_0001>
module attributes {stable_mosaic.version = 11 : i64} {
  func.func @_se_fused_kernel(%arg0: i32, %arg1: memref<1x10x256xf32, #tpu.memory_space<vmem>>, %arg2: memref<10x2xf32, #tpu.memory_space<vmem>>, %arg3: memref<2x10xf32, #tpu.memory_space<vmem>>, %arg4: memref<1x10x1xf32, #tpu.memory_space<vmem>>, %arg5: memref<1x10x256xf32, #tpu.memory_space<vmem>>) attributes {dimension_semantics = [#tpu.dimension_semantics<parallel>], iteration_bounds = array<i64: 2>, scalar_prefetch = 0 : i64, scratch_operands = 0 : i64, tpu.core_type = #tpu.core_type<tc>, window_params = [{transform_indices = @transform_0, window_bounds = array<i64: 1, 10, 256>}, {pipeline_mode = #tpu.pipeline_mode<synchronous>, transform_indices = @transform_1, window_bounds = array<i64: 10, 2>}, {pipeline_mode = #tpu.pipeline_mode<synchronous>, transform_indices = @transform_2, window_bounds = array<i64: 2, 10>}, {transform_indices = @transform_3, window_bounds = array<i64: 1, 10, 1>}, {transform_indices = @transform_4, window_bounds = array<i64: 1, 10, 256>}]} {
    %c0 = arith.constant 0 : index
    %c0_0 = arith.constant 0 : index
    %c0_1 = arith.constant 0 : index
    %0 = vector.load %arg1[%c0, %c0_0, %c0_1] : memref<1x10x256xf32, #tpu.memory_space<vmem>>, vector<1x10x256xf32>
    %cst = arith.constant dense<0.000000e+00> : vector<1x10xf32>
    %1 = vector.multi_reduction <add>, %0, %cst [2] : vector<1x10x256xf32> to vector<1x10xf32>
    %cst_2 = arith.constant 3.906250e-03 : f32
    %2 = vector.broadcast %cst_2 : f32 to vector<1x10xf32>
    %3 = arith.mulf %1, %2 : vector<1x10xf32>
    %c0_3 = arith.constant 0 : index
    %c0_4 = arith.constant 0 : index
    %4 = vector.load %arg2[%c0_3, %c0_4] : memref<10x2xf32, #tpu.memory_space<vmem>>, vector<10x2xf32>
    %cst_5 = arith.constant dense<0.000000e+00> : vector<1x2xf32>
    %5 = tpu.matmul %3, %4, %cst_5 {dimension_numbers = #tpu.dot_dimension_numbers<[1], [0], [0], [1], [0, 0, 1, 1], [], []>} : vector<1x10xf32>, vector<10x2xf32>, vector<1x2xf32> -> vector<1x2xf32>
    %cst_6 = arith.constant 0.000000e+00 : f32
    %6 = vector.broadcast %cst_6 : f32 to vector<1x2xf32>
    %7 = arith.maximumf %5, %6 : vector<1x2xf32>
    %c0_7 = arith.constant 0 : index
    %c0_8 = arith.constant 0 : index
    %8 = vector.load %arg3[%c0_7, %c0_8] : memref<2x10xf32, #tpu.memory_space<vmem>>, vector<2x10xf32>
    %cst_9 = arith.constant dense<0.000000e+00> : vector<1x10xf32>
    %9 = tpu.matmul %7, %8, %cst_9 {dimension_numbers = #tpu.dot_dimension_numbers<[1], [0], [0], [1], [0, 0, 1, 1], [], []>} : vector<1x2xf32>, vector<2x10xf32>, vector<1x10xf32> -> vector<1x10xf32>
    %10 = arith.negf %9 : vector<1x10xf32>
    %11 = math.exp %10 : vector<1x10xf32>
    %cst_10 = arith.constant 1.000000e+00 : f32
    %12 = vector.broadcast %cst_10 : f32 to vector<1x10xf32>
    %13 = arith.addf %12, %11 : vector<1x10xf32>
    %14 = arith.divf %12, %13 : vector<1x10xf32>
    %15 = vector.shape_cast %14 : vector<1x10xf32> to vector<1x10x1xf32>
    %c0_11 = arith.constant 0 : index
    %c0_12 = arith.constant 0 : index
    %c0_13 = arith.constant 0 : index
    %16 = vector.load %arg4[%c0_11, %c0_12, %c0_13] : memref<1x10x1xf32, #tpu.memory_space<vmem>>, vector<1x10x1xf32>
    tpu.vector_store %arg4[%c0_11, %c0_12, %c0_13], %15 {strides = array<i32>} : memref<1x10x1xf32, #tpu.memory_space<vmem>>, vector<1x10x1xf32>,
    %c0_14 = arith.constant 0 : index
    %c0_15 = arith.constant 0 : index
    %c0_16 = arith.constant 0 : index
    %17 = vector.load %arg1[%c0_14, %c0_15, %c0_16] : memref<1x10x256xf32, #tpu.memory_space<vmem>>, vector<1x10x256xf32>
    %18 = vector.broadcast %15 : vector<1x10x1xf32> to vector<1x10x256xf32>
    %19 = arith.mulf %17, %18 : vector<1x10x256xf32>
    %c0_17 = arith.constant 0 : index
    %c0_18 = arith.constant 0 : index
    %c0_19 = arith.constant 0 : index
    %20 = vector.load %arg5[%c0_17, %c0_18, %c0_19] : memref<1x10x256xf32, #tpu.memory_space<vmem>>, vector<1x10x256xf32>
    tpu.vector_store %arg5[%c0_17, %c0_18, %c0_19], %19 {strides = array<i32>} : memref<1x10x256xf32, #tpu.memory_space<vmem>>, vector<1x10x256xf32>,
    return
  }
  func.func @transform_0(%arg0: i32) -> (i32, i32, i32) {
    %c0_i32 = arith.constant 0 : i32
    %c0_i32_0 = arith.constant 0 : i32
    %c0_i32_1 = arith.constant 0 : i32
    return %arg0, %c0_i32, %c0_i32_0 : i32, i32, i32
  }
  func.func @transform_1(%arg0: i32) -> (i32, i32) {
    %c0_i32 = arith.constant 0 : i32
    %c0_i32_0 = arith.constant 0 : i32
    %c0_i32_1 = arith.constant 0 : i32
    return %c0_i32, %c0_i32_0 : i32, i32
  }
  func.func @transform_2(%arg0: i32) -> (i32, i32) {
    %c0_i32 = arith.constant 0 : i32
    %c0_i32_0 = arith.constant 0 : i32
    %c0_i32_1 = arith.constant 0 : i32
    return %c0_i32, %c0_i32_0 : i32, i32
  }
  func.func @transform_3(%arg0: i32) -> (i32, i32, i32) {
    %c0_i32 = arith.constant 0 : i32
    %c0_i32_0 = arith.constant 0 : i32
    %c0_i32_1 = arith.constant 0 : i32
    return %arg0, %c0_i32, %c0_i32_0 : i32, i32, i32
  }
  func.func @transform_4(%arg0: i32) -> (i32, i32, i32) {
    %c0_i32 = arith.constant 0 : i32
    %c0_i32_0 = arith.constant 0 : i32
    %c0_i32_1 = arith.constant 0 : i32
    return %arg0, %c0_i32, %c0_i32_0 : i32, i32, i32
  }
}

</mosaic_0001>

<llo_original>
// kernel: tpu_custom_call.1
$region0: #{tpu_custom_call.1}
  #allocation0 [shape = 'u32[]', space=smem, size = 0x4, offset = 0x4, fixed_abs, tag = 'smem constant byte address 0x4 - core index']
  #allocation1 [shape = 'u32[72,128]{1,0:T(1,128)}', space=vmem, size = 0x9000, scoped, tag = 'internal scratch']
  %s0 = inlined_call_operand.vmem [shape: f32[2,10,256], index: 0, kind: input, shape index: {}]
  %s1 = inlined_call_operand.vmem [shape: f32[10,2], index: 1, kind: input, shape index: {}]
  %s2 = inlined_call_operand.vmem [shape: f32[2,10], index: 2, kind: input, shape index: {}]
  %s3 = inlined_call_operand.vmem [shape: f32[2,10,1], index: 3, kind: output, shape index: {0}]
  %s4 = inlined_call_operand.vmem [shape: f32[2,10,256], index: 4, kind: output, shape index: {1}]
  %5 = xla_tuple %s3, %s4
  %s6 = sld [smem:[#allocation0]]
  $region53: #{tpu_custom_call.1} parent=0
    _
  %s8 = ssub.s32 1, %s6
  %s9 = scalar_select 0, %s8, %s6
  loop: start=0, step=1, limit=4
  $region2: #{tpu_custom_call.1} parent=0 // loop_pre_header
    _
  $region3: #{tpu_custom_call.1} parent=0 // loop_header
    %s11 = sphi 0, %s15
    %p12 = scmp.ge.s32.totalorder %s11, 4
    %s21 = sphi 0, %s23
    %s24 = sphi 0, %s21
    %s25 = sphi 0, %s24
    %s41 = sphi 0, %s25
    %s45 = sphi 0, %s45
    %s47 = sphi 0, %s45
    %s48 = sphi 0, %s47
    %s62 = sphi 0, %s48
    %s66 = sphi 0, %s66
    %s68 = sphi 0, %s66
    %s69 = sphi 0, %s68
    %s83 = sphi 0, %s69
    %s89 = sphi 0, %s91
    %s92 = sphi 0, %s89
    %s93 = sphi 0, %s92
    %s109 = sphi 0, %s93
    %s115 = sphi 0, %s117
    %s118 = sphi 0, %s115
    %s119 = sphi 0, %s118
    %s135 = sphi 0, %s119
  $region4: #{tpu_custom_call.1} parent=0 // loop_header_branch
    %14 = sbr.rel (%p12) target = $region8
  $region5: #{tpu_custom_call.1} parent=0 // loop_body
    %s16 = ssub.s32 %s11, 1
    %s17 = ssub.s32 %s11, 2
    %s18 = sadd.s32 %s11, 1
    %s19 = ssub.s32 %s11, %s18
    %p20 = scmp.eq.s32.totalorder %s19, 0
    %s22 = sadd.s32 %s21, 1
    %s23 = scalar_select %p20, %s21, %s22
    %p26 = pneg %p20
    %p27 = scmp.eq.s32.totalorder %s11, 1
    %p28 = por %p26, %p27
    %p29 = scmp.ne.s32.totalorder %s21, %s24
    %p30 = scmp.eq.s32.totalorder %s11, 0
    %p31 = por %p29, %p30
    %p32 = scmp.ne.s32.totalorder %s21, %s24
    %p33 = scmp.eq.s32.totalorder %s16, 1
    %p34 = por %p32, %p33
    %p35 = scmp.ne.s32.totalorder %s24, %s25
    %p36 = scmp.eq.s32.totalorder %s16, 0
    %p37 = por %p35, %p36
    %p38 = scmp.ne.s32.totalorder %s24, %s25
    %p39 = scmp.eq.s32.totalorder %s17, 1
    %p40 = por %p38, %p39
    %p42 = scmp.ne.s32.totalorder %s25, %s41
    %p43 = scmp.eq.s32.totalorder %s17, 0
    %p44 = por %p42, %p43
    %s46 = sadd.s32 %s45, 1
    %p49 = scmp.eq.s32.totalorder %s11, 1
    %p50 = scmp.ne.s32.totalorder %s45, %s47
    %p51 = scmp.eq.s32.totalorder %s11, 0
    %p52 = por %p50, %p51
    %p53 = scmp.ne.s32.totalorder %s45, %s47
    %p54 = scmp.eq.s32.totalorder %s16, 1
    %p55 = por %p53, %p54
    %p56 = scmp.ne.s32.totalorder %s47, %s48
    %p57 = scmp.eq.s32.totalorder %s16, 0
    %p58 = por %p56, %p57
    %p59 = scmp.ne.s32.totalorder %s47, %s48
    %p60 = scmp.eq.s32.totalorder %s17, 1
    %p61 = por %p59, %p60
    %p63 = scmp.ne.s32.totalorder %s48, %s62
    %p64 = scmp.eq.s32.totalorder %s17, 0
    %p65 = por %p63, %p64
    %s67 = sadd.s32 %s66, 1
    %p70 = scmp.eq.s32.totalorder %s11, 1
    %p71 = scmp.ne.s32.totalorder %s66, %s68
    %p72 = scmp.eq.s32.totalorder %s11, 0
    %p73 = por %p71, %p72
    %p74 = scmp.ne.s32.totalorder %s66, %s68
    %p75 = scmp.eq.s32.totalorder %s16, 1
    %p76 = por %p74, %p75
    %p77 = scmp.ne.s32.totalorder %s68, %s69
    %p78 = scmp.eq.s32.totalorder %s16, 0
    %p79 = por %p77, %p78
    %p80 = scmp.ne.s32.totalorder %s68, %s69
    %p81 = scmp.eq.s32.totalorder %s17, 1
    %p82 = por %p80, %p81
    %p84 = scmp.ne.s32.totalorder %s69, %s83
    %p85 = scmp.eq.s32.totalorder %s17, 0
    %p86 = por %p84, %p85
    %s87 = ssub.s32 %s11, %s18
    %p88 = scmp.eq.s32.totalorder %s87, 0
    %s90 = sadd.s32 %s89, 1
    %s91 = scalar_select %p88, %s89, %s90
    %p94 = pneg %p88
    %p95 = scmp.eq.s32.totalorder %s11, 1
    %p96 = por %p94, %p95
    %p97 = scmp.ne.s32.totalorder %s89, %s92
    %p98 = scmp.eq.s32.totalorder %s11, 0
    %p99 = por %p97, %p98
    %p100 = scmp.ne.s32.totalorder %s89, %s92
    %p101 = scmp.eq.s32.totalorder %s16, 1
    %p102 = por %p100, %p101
    %p103 = scmp.ne.s32.totalorder %s92, %s93
    %p104 = scmp.eq.s32.totalorder %s16, 0
    %p105 = por %p103, %p104
    %p106 = scmp.ne.s32.totalorder %s92, %s93
    %p107 = scmp.eq.s32.totalorder %s17, 1
    %p108 = por %p106, %p107
    %p110 = scmp.ne.s32.totalorder %s93, %s109
    %p111 = scmp.eq.s32.totalorder %s17, 0
    %p112 = por %p110, %p111
    %s113 = ssub.s32 %s11, %s18
    %p114 = scmp.eq.s32.totalorder %s113, 0
    %s116 = sadd.s32 %s115, 1
    %s117 = scalar_select %p114, %s115, %s116
    %p120 = pneg %p114
    %p121 = scmp.eq.s32.totalorder %s11, 1
    %p122 = por %p120, %p121
    %p123 = scmp.ne.s32.totalorder %s115, %s118
    %p124 = scmp.eq.s32.totalorder %s11, 0
    %p125 = por %p123, %p124
    %p126 = scmp.ne.s32.totalorder %s115, %s118
    %p127 = scmp.eq.s32.totalorder %s16, 1
    %p128 = por %p126, %p127
    %p129 = scmp.ne.s32.totalorder %s118, %s119
    %p130 = scmp.eq.s32.totalorder %s16, 0
    %p131 = por %p129, %p130
    %p132 = scmp.ne.s32.totalorder %s118, %s119
    %p133 = scmp.eq.s32.totalorder %s17, 1
    %p134 = por %p132, %p133
    %p136 = scmp.ne.s32.totalorder %s119, %s135
    %p137 = scmp.eq.s32.totalorder %s17, 0
    %p138 = por %p136, %p137
    %p139 = scmp.le.s32.totalorder 1, %s11
    %p140 = scmp.lt.s32.totalorder %s11, 3
    %p141 = pnand %p139, %p140
    %p142 = pneg %p141
    // Predicated region
    $region9: #{tpu_custom_call.1} parent=5 // pred_check
      _
    $region10: #{tpu_custom_call.1} parent=5 // pred_check_branch
      %144 = sbr.rel (%p141) target = $region12
    $region11: #{tpu_custom_call.1} parent=5 // pred_region
      %s145 = ssub.s32 %s11, 1
      // Predicated region
      $region13: #{tpu_custom_call.1} parent=11 // pred_check
        %p146 = pneg %p58
      $region14: #{tpu_custom_call.1} parent=11 // pred_check_branch
        %148 = sbr.rel (%p146) target = $region16
      $region15: #{tpu_custom_call.1} parent=11 // pred_region
        _
      $region16: #{tpu_custom_call.1} parent=11 // pred_fallthru
        _
      // Predicated region
      $region17: #{tpu_custom_call.1} parent=11 // pred_check
        %p149 = pneg %p79
      $region18: #{tpu_custom_call.1} parent=11 // pred_check_branch
        %151 = sbr.rel (%p149) target = $region20
      $region19: #{tpu_custom_call.1} parent=11 // pred_region
        _
      $region20: #{tpu_custom_call.1} parent=11 // pred_fallthru
        _
    $region12: #{tpu_custom_call.1} parent=5 // pred_fallthru
      _
    %p152 = scmp.lt.s32.totalorder %s11, 2
    // Predicated region
    $region21: #{tpu_custom_call.1} parent=5 // pred_check
      %p153 = pneg %p152
    $region22: #{tpu_custom_call.1} parent=5 // pred_check_branch
      %155 = sbr.rel (%p153) target = $region24
    $region23: #{tpu_custom_call.1} parent=5 // pred_region
      // Predicated region
      $region25: #{tpu_custom_call.1} parent=23 // pred_check
        %p156 = pneg %p31
      $region26: #{tpu_custom_call.1} parent=23 // pred_check_branch
        %158 = sbr.rel (%p156) target = $region28
      $region27: #{tpu_custom_call.1} parent=23 // pred_region
        %p159 = scmp.lt.s32.totalorder %s11, 1
        %s160 = scalar_select %p159, %s11, 1
        %s161 = smul.addr %s160, 4
        %s162 = smul.addr %s161, 8
        %s163 = scalar_lea.vmem %s0, %s162
      $region28: #{tpu_custom_call.1} parent=23 // pred_fallthru
        _
    $region24: #{tpu_custom_call.1} parent=5 // pred_fallthru
      _
    %p164 = scmp.le.s32.totalorder 1, %s11
    %p165 = scmp.lt.s32.totalorder %s11, 3
    %p166 = pnand %p164, %p165
    %p167 = pneg %p166
    // Predicated region
    $region29: #{tpu_custom_call.1} parent=5 // pred_check
      _
    $region30: #{tpu_custom_call.1} parent=5 // pred_check_branch
      %169 = sbr.rel (%p166) target = $region32
    $region31: #{tpu_custom_call.1} parent=5 // pred_region
      %s170 = ssub.s32 %s11, 1
      %p171 = scmp.lt.s32.totalorder %s16, 1
      %s172 = scalar_select %p171, %s16, 1
      %s173 = smul.addr %s172, 4
      %s174 = smul.addr %s173, 8
      %s175 = scalar_lea.vmem %s0, %s174
      %p176 = pneg %p37
      %p177 = pneg %p34
      %p178 = pneg %p58
      %p179 = pneg %p55
      %p180 = pneg %p79
      %p181 = pneg %p76
      %p182 = pneg %p105
      %p183 = pneg %p102
      %p184 = scmp.lt.s32.totalorder %s16, 1
      %s185 = scalar_select %p184, %s16, 1
      %s186 = smul.addr %s185, 2
      %s187 = smul.addr %s186, 8
      %s188 = scalar_lea.vmem %s3, %s187
      %p189 = pneg %p131
      %p190 = pneg %p128
      %p191 = scmp.lt.s32.totalorder %s16, 1
      %s192 = scalar_select %p191, %s16, 1
      %s193 = smul.addr %s192, 4
      %s194 = smul.addr %s193, 8
      %s195 = scalar_lea.vmem %s4, %s194
      %p196 = scmp.lt.s32.totalorder %s16, 1
      %s197 = scalar_select %p196, %s16, 1
      %s198 = smul.addr %s197, 4
      %s199 = smul.addr %s198, 8
      %s200 = scalar_lea.vmem %s0, %s199
      %p201 = scmp.lt.s32.totalorder %s16, 1
      %s202 = scalar_select %p201, %s16, 1
      %s203 = smul.addr %s202, 2
      %s204 = smul.addr %s203, 8
      %s205 = scalar_lea.vmem %s3, %s204
      %p206 = scmp.lt.s32.totalorder %s16, 1
      %s207 = scalar_select %p206, %s16, 1
      %s208 = smul.addr %s207, 4
      %s209 = smul.addr %s208, 8
      %s210 = scalar_lea.vmem %s4, %s209
      %v211 = vld [vmem:[%s200] sm:$0xff]
      %v212 = vld [vmem:[%s200 + $0x8] sm:$0xff]
      %v213 = vld [vmem:[%s200 + $0x10] sm:$0x3]
      %v214 = vld [vmem:[%s200 + $0x18] sm:$0x3]
      %v215 = vadd.f32 %v211, %v212
      %216 = vadd.xlane.f32.xlu0 %v215
      %v217 = vpop.xlane.xlu0 %216
      %vm218 = vcmask 1041408
      %v219 = vsel %vm218, %v213, 0.0
      %v220 = vsel %vm218, %v214, 0.0
      %v221 = vadd.f32 %v219, %v220
      %222 = vadd.xlane.f32.xlu0 %v221
      %v223 = vpop.xlane.xlu0 %222
      %v224 = vmul.f32 %v217, 0.00390625
      %v225 = vmul.f32 %v223, 0.00390625
      %v226 = vld [vmem:[%s1] sm:$0xff]
      %v227 = vld [vmem:[%s1 + $0x8] sm:$0x3]
      %v230 = vlaneseq
      %v231 = vand.u32 %v230, 127
      %v232 = vperm.slane %v224, %v231
      %v233 = vadd.s32 %v231, 4294967288
      %v234 = vperm.slane %v225, %v233
      %vm235 = vcmask 130112
      %v236 = vsel %vm235, %v234, %v232
      %vm237 = vcmask 80896
      %v238 = vsel %vm237, %v236, 0
      %v241 = vsel %vm218, %v227, 0
      %243 = vmatpush.msra.mxu0 0.0
      %244 = vmatpush.msra.mxu0 0.0
      %245 = vmatpush.msra.mxu0 0.0
      %246 = vmatpush.msra.mxu0 0.0
      %247 = vmatpush.msra.mxu0 0.0
      %248 = vmatpush.msra.mxu0 0.0
      %249 = vmatpush.msra.mxu0 0.0
      %250 = vmatpush.msra.mxu0 0.0
      %251 = vmatpush.msra.mxu0 0.0
      %252 = vmatpush.msra.mxu0 0.0
      %253 = vmatpush.msra.mxu0 0.0
      %254 = vmatpush.msra.mxu0 0.0
      %255 = vmatpush.msra.mxu0 0.0
      %256 = vmatpush.msra.mxu0 0.0
      %257 = vmatpush.msra.mxu0 %v241
      %258 = vmatpush.msra.mxu0 %v226
      %259 = vmatmul.f32.gmra.mxu0 %v238
      %v260 = vpop.f32.mrf.mxu0
      %v261 = vadd.f32 0.0, %v260
      %262 = vdwg.mxu0
      %v263 = vmax.f32 %v261, 0.0
      %v264 = vld [vmem:[%s2] sm:$0x3]
      %vm265 = vcmask 15360
      %v267 = vsel %vm265, %v263, 0
      %v270 = vsel %vm218, %v264, 0
      %272 = vmatpush.msra.mxu0 0.0
      %273 = vmatpush.msra.mxu0 0.0
      %274 = vmatpush.msra.mxu0 0.0
      %275 = vmatpush.msra.mxu0 0.0
      %276 = vmatpush.msra.mxu0 0.0
      %277 = vmatpush.msra.mxu0 0.0
      %278 = vmatpush.msra.mxu0 0.0
      %279 = vmatpush.msra.mxu0 0.0
      %280 = vmatpush.msra.mxu0 0.0
      %281 = vmatpush.msra.mxu0 0.0
      %282 = vmatpush.msra.mxu0 0.0
      %283 = vmatpush.msra.mxu0 0.0
      %284 = vmatpush.msra.mxu0 0.0
      %285 = vmatpush.msra.mxu0 0.0
      %286 = vmatpush.msra.mxu0 0.0
      %287 = vmatpush.msra.mxu0 %v270
      %288 = vmatmul.f32.gmra.mxu0 %v267
      %v289 = vpop.f32.mrf.mxu0
      %v290 = vadd.f32 0.0, %v289
      %291 = vdwg.mxu0
      %v292 = vxor.u32 %v290, 2147483648
      %v293 = vmul.f32 %v292, 1.442695
      %v294 = vpow.pop %v293
      %v295 = vadd.f32 %v294, 1.0
      %v296 = vrcp.pop %v295
      %v297 = vmul.f32 %v295, %v296
      %v298 = vsub.f32 1.0, %v297
      %v299 = vmul.f32 %v296, %v298
      %v300 = vadd.f32 %v296, %v299
      %vm301 = vweird.f32 %v295
      %vm302 = vweird.f32 %v296
      %vm303 = vmor %vm301, %vm302
      %v304 = vsel %vm303, %v296, %v300
      %v305 = vand.u32 2147483647, %v295
      %vm306 = vcmp.eq.f32.partialorder %v305, 8.507059e+37
      %v307 = vand.u32 %v295, 2147483648
      %v308 = vor.u32 1.1754944e-38, %v307
      %v309 = vsel %vm306, %v308, %v304
      %v310 = vmul.f32 1.0, %v309
      %v311 = vperm.slane %v310, 0
      %v312 = vlaneseq
      %v313 = vshrl.u32 %v312, 7
      %315 = vset.pattern.permute.xlu0 %v313
      %316 = vperm.xlu0 %315, %v311
      %v317 = vpop.permute.xlu0 %316
      %v318 = vlaneseq
      %v319 = vshrl.u32 %v318, 7
      %v320 = vadd.s32 %v319, 8
      %321 = vset.pattern.permute.xlu0 %v320
      %322 = vperm.xlu0 %321, %v311
      %v323 = vpop.permute.xlu0 %322
      %vm324 = vcmask 7168
      %325 = vst.msk [vmem:[%s205] sm:$0xff] %vm324, %v317
      %vm326 = vcmask 1024
      %327 = vst.msk [vmem:[%s205 + $0x8] sm:$0x3] %vm326, %v323
      %v328 = vld [vmem:[%s200] sm:$0xff]
      %v329 = vld [vmem:[%s200 + $0x8] sm:$0xff]
      %v330 = vld [vmem:[%s200 + $0x10] sm:$0x3]
      %v331 = vld [vmem:[%s200 + $0x18] sm:$0x3]
      %v332 = vmul.f32 %v328, %v317
      %v333 = vmul.f32 %v329, %v317
      %v334 = vmul.f32 %v330, %v323
      %v335 = vmul.f32 %v331, %v323
      %336 = vst [vmem:[%s210] sm:$0xff] %v332
      %337 = vst [vmem:[%s210 + $0x8] sm:$0xff] %v333
      %338 = vst [vmem:[%s210 + $0x10] sm:$0x3] %v334
      %339 = vst [vmem:[%s210 + $0x18] sm:$0x3] %v335
      %p340 = scmp.lt.s32.totalorder %s16, 1
      %s341 = scalar_select %p340, %s16, 1
      %s342 = smul.addr %s341, 2
      %s343 = smul.addr %s342, 8
      %s344 = scalar_lea.vmem %s3, %s343
      %p345 = scmp.lt.s32.totalorder %s16, 1
      %s346 = scalar_select %p345, %s16, 1
      %s347 = smul.addr %s346, 4
      %s348 = smul.addr %s347, 8
      %s349 = scalar_lea.vmem %s4, %s348
      // Predicated region
      $region33: #{tpu_custom_call.1} parent=31 // pred_check
        %p350 = pneg %p102
      $region34: #{tpu_custom_call.1} parent=31 // pred_check_branch
        %352 = sbr.rel (%p350) target = $region36
      $region35: #{tpu_custom_call.1} parent=31 // pred_region
        _
      $region36: #{tpu_custom_call.1} parent=31 // pred_fallthru
        _
      // Predicated region
      $region37: #{tpu_custom_call.1} parent=31 // pred_check
        %p353 = pneg %p128
      $region38: #{tpu_custom_call.1} parent=31 // pred_check_branch
        %355 = sbr.rel (%p353) target = $region40
      $region39: #{tpu_custom_call.1} parent=31 // pred_region
        _
      $region40: #{tpu_custom_call.1} parent=31 // pred_fallthru
        _
    $region32: #{tpu_custom_call.1} parent=5 // pred_fallthru
      _
    %p356 = scmp.le.s32.totalorder 2, %s11
    // Predicated region
    $region41: #{tpu_custom_call.1} parent=5 // pred_check
      %p357 = pneg %p356
    $region42: #{tpu_custom_call.1} parent=5 // pred_check_branch
      %359 = sbr.rel (%p357) target = $region44
    $region43: #{tpu_custom_call.1} parent=5 // pred_region
      %s360 = ssub.s32 %s11, 2
      // Predicated region
      $region45: #{tpu_custom_call.1} parent=43 // pred_check
        %p361 = pneg %p108
      $region46: #{tpu_custom_call.1} parent=43 // pred_check_branch
        %363 = sbr.rel (%p361) target = $region48
      $region47: #{tpu_custom_call.1} parent=43 // pred_region
        %p364 = scmp.lt.s32.totalorder %s17, 1
        %s365 = scalar_select %p364, %s17, 1
        %s366 = smul.addr %s365, 2
        %s367 = smul.addr %s366, 8
        %s368 = scalar_lea.vmem %s3, %s367
      $region48: #{tpu_custom_call.1} parent=43 // pred_fallthru
        _
      // Predicated region
      $region49: #{tpu_custom_call.1} parent=43 // pred_check
        %p369 = pneg %p134
      $region50: #{tpu_custom_call.1} parent=43 // pred_check_branch
        %371 = sbr.rel (%p369) target = $region52
      $region51: #{tpu_custom_call.1} parent=43 // pred_region
        %p372 = scmp.lt.s32.totalorder %s17, 1
        %s373 = scalar_select %p372, %s17, 1
        %s374 = smul.addr %s373, 4
        %s375 = smul.addr %s374, 8
        %s376 = scalar_lea.vmem %s4, %s375
      $region52: #{tpu_custom_call.1} parent=43 // pred_fallthru
        _
    $region44: #{tpu_custom_call.1} parent=5 // pred_fallthru
      _
  $region6: #{tpu_custom_call.1} parent=0 // loop_footer
    %s15 = sadd.s32 1, %s11
  $region7: #{tpu_custom_call.1} parent=0 // loop_footer_branch
    %10 = sbr.rel target = $region3
  $region8: #{tpu_custom_call.1} parent=0 // loop_exit
    _

</llo_original>
